<compile_context>
chip_gen: v7x
topology: tpu7x:2x2x1
jax: 0.10.0
libtpu: 0.0.40
codegen_flags: <defaults>
</compile_context>

<pallas_src>
import math

import jax
import jax.numpy as jnp
from jax.experimental import pallas as pl
from jax.experimental.pallas import tpu as pltpu


def _round_up(x, m):
    return ((x + m - 1) // m) * m


def _vmem_capacity_bytes():
    try:
        info = pltpu.get_tpu_info()
        cap = getattr(info, "vmem_capacity_bytes", None)
        if cap:
            return int(cap)
    except Exception:
        pass
    return 128 * 1024 * 1024  # v5e / v6e default


def plan_generator(d_model, vocab):
    """Per-generation tiling plan (derived once, reused across forward calls)."""
    vmem_cap = _vmem_capacity_bytes()
    # Leave headroom for Mosaic internal scratch: ~48 MiB on v7x (64 MiB VMEM),
    # ~96 MiB on v5e / v6e (128 MiB VMEM).
    budget = min(int(vmem_cap * 0.75), vmem_cap - (8 << 20))

    # vocab tile: cap so the double-buffered bf16 W tile uses at most ~1/4 of budget.
    w_cap = max(128, (budget // (16 * d_model)) // 128 * 128)
    v_tile = int(min(2048, w_cap, _round_up(vocab, 128)))
    V_pad = int(_round_up(vocab, v_tile))
    # Padding safety: V_pad - vocab < v_tile guarantees the last vocab tile always has
    # at least one real column, so the -1e30 padded bias can never be the sole
    # contribution to the running max / sum-exp.
    assert 0 <= V_pad - vocab < v_tile

    return {
        "d_model": int(d_model),
        "vocab": int(vocab),
        "v_tile": v_tile,
        "V_pad": V_pad,
        "vmem_budget": int(budget),
    }


def prepare_generator_weights(weight, bias, plan):
    """One-time parameter prep (hoisted out of the forward pass).

    weight: (vocab, d_model) as in nn.Linear; bias: (vocab,).
    Returns (W^T in bf16 of shape (d_model, V_pad), bias in f32 of shape (1, V_pad)).
    """
    vocab, V_pad = plan["vocab"], plan["V_pad"]
    w = jnp.asarray(weight).T.astype(jnp.bfloat16)            # (d_model, vocab)
    b = jnp.asarray(bias).astype(jnp.float32).reshape(1, vocab)
    if V_pad != vocab:
        w = jnp.pad(w, ((0, 0), (0, V_pad - vocab)))
        # Very negative bias on padded columns so they never affect max / lse.
        b = jnp.pad(b, ((0, 0), (0, V_pad - vocab)), constant_values=-1e30)
    return w, b


def _choose_tm(M, plan):
    d_model = plan["d_model"]
    v_tile = plan["v_tile"]
    V_pad = plan["V_pad"]
    budget = plan["vmem_budget"]
    # VMEM that does not scale with tm: double-buffered W and bias tiles.
    fixed = 2 * d_model * v_tile * 2 + 2 * 8 * v_tile * 4
    m_cap = _round_up(M, 8)
    tm = 8
    for cand in (1024, 512, 256, 128, 64, 32, 16, 8):
        if cand > m_cap:
            continue
        per_row = (
            2 * cand * d_model * 2      # x tile, double-buffered bf16
            + 2 * cand * V_pad * 4      # resident output slab, double-buffered f32
            + cand * V_pad * 4          # raw-logit scratch slab f32
            + 2 * cand * 128 * 4        # running max / sum-exp (lane-padded)
        )
        if fixed + per_row <= budget:
            tm = cand
            break
    # TODO(synk): when even tm=8 does not fit the budget (very large vocab on v7x),
    # fall back to a two-sweep (recompute) variant instead of the resident slab.
    # TODO(synk): on dual-TensorCore parts (v7x), shrink tm for tiny-M decode shapes
    # so the row axis still splits across both cores.
    return tm


def _fused_logsoftmax_kernel(x_ref, w_ref, b_ref, out_ref, slab_ref, m_sc, l_sc):
    # x_ref    : (tm, d_model)      bf16
    # w_ref    : (d_model, v_tile)  bf16  (streamed along the vocab grid axis)
    # b_ref    : (1, v_tile)        f32
    # out_ref  : (tm, V_pad)        f32   resident across the vocab axis
    # slab_ref : (nv, tm, v_tile)   f32   raw-logit stash for the current row tile
    # m_sc/l_sc: (tm, 1)            f32   running max / running sum-exp
    j = pl.program_id(1)

    @pl.when(j == 0)
    def _():
        # -inf running max is safe for finite inputs (exp(-inf - m_new) == 0); an
        # inf/NaN in x or W propagates NaN, matching the torch reference behavior.
        m_sc[...] = jnp.full_like(m_sc, -jnp.inf)
        l_sc[...] = jnp.zeros_like(l_sc)

    logits = (
        jnp.dot(x_ref[...], w_ref[...], preferred_element_type=jnp.float32)
        + b_ref[...]
    )
    slab_ref[j] = logits

    # Online log-sum-exp across vocab tiles.
    blk_max = jnp.max(logits, axis=-1, keepdims=True)
    m_new = jnp.maximum(m_sc[...], blk_max)
    l_sc[...] = l_sc[...] * jnp.exp(m_sc[...] - m_new) + jnp.sum(
        jnp.exp(logits - m_new), axis=-1, keepdims=True
    )
    m_sc[...] = m_new

    @pl.when(j == pl.num_programs(1) - 1)
    def _():
        lse = m_sc[...] + jnp.log(l_sc[...])
        nv, _, v_tile = slab_ref.shape
        # Static unrolled VMEM->VMEM copy: normalized log-probs land in the resident
        # output block, which is written back to HBM exactly once per row tile.
        for k in range(nv):
            out_ref[:, k * v_tile:(k + 1) * v_tile] = slab_ref[k] - lse


def generator_forward(x, w_prep, b_prep, plan):
    """x: (batch, seq, d_model) -> float32 log-probabilities (batch, seq, vocab)."""
    batch, seq, d_model = x.shape
    assert d_model == plan["d_model"]
    vocab, V_pad, v_tile = plan["vocab"], plan["V_pad"], plan["v_tile"]
    M = batch * seq

    tm = _choose_tm(M, plan)
    M_pad = _round_up(M, tm)
    nv = V_pad // v_tile
    grid = (M_pad // tm, nv)

    x2d = x.reshape(M, d_model).astype(jnp.bfloat16)
    if M_pad != M:
        x2d = jnp.pad(x2d, ((0, M_pad - M), (0, 0)))

    n_row_blocks = M_pad // tm
    cost = pl.CostEstimate(
        flops=2 * M_pad * d_model * V_pad,
        transcendentals=M_pad * V_pad + 2 * M_pad * nv,
        bytes_accessed=(
            M_pad * d_model * 2                      # x read (bf16)
            + n_row_blocks * d_model * V_pad * 2     # W streamed once per row block
            + n_row_blocks * V_pad * 4               # bias per row block
            + M_pad * V_pad * 4                      # single log-prob write
        ),
    )

    out = pl.pallas_call(
        _fused_logsoftmax_kernel,
        out_shape=jax.ShapeDtypeStruct((M_pad, V_pad), jnp.float32),
        grid_spec=pltpu.PrefetchScalarGridSpec(
            num_scalar_prefetch=0,
            grid=grid,
            in_specs=[
                pl.BlockSpec((tm, d_model), lambda i, j: (i, 0)),      # x rows
                pl.BlockSpec((d_model, v_tile), lambda i, j: (0, j)),  # weight stream
                pl.BlockSpec((1, v_tile), lambda i, j: (0, j)),        # bias tile
            ],
            out_specs=pl.BlockSpec((tm, V_pad), lambda i, j: (i, 0)),  # resident slab
            scratch_shapes=[
                pltpu.VMEM((nv, tm, v_tile), jnp.float32),  # raw-logit slab
                pltpu.VMEM((tm, 1), jnp.float32),           # running max
                pltpu.VMEM((tm, 1), jnp.float32),           # running sum-exp
            ],
        ),
        compiler_params=pltpu.CompilerParams(
            dimension_semantics=("parallel", "arbitrary"),
            vmem_limit_bytes=plan["vmem_budget"],
        ),
        cost_estimate=cost,
    )(x2d, w_prep, b_prep)

    return out[:M, :vocab].reshape(batch, seq, vocab)


if __name__ == "__main__":
    # Small shapes consistent with Generator(d_model, vocab)
    batch, seq, d_model, vocab = 2, 8, 32, 128

    key = jax.random.PRNGKey(0)
    kx, kw, kb = jax.random.split(key, 3)

    # nn.Linear-style init: U(-1/sqrt(d_model), 1/sqrt(d_model))
    bound = 1.0 / math.sqrt(d_model)
    weight = jax.random.uniform(kw, (vocab, d_model), jnp.float32, -bound, bound)
    bias = jax.random.uniform(kb, (vocab,), jnp.float32, -bound, bound)
    x = jax.random.normal(kx, (batch, seq, d_model), jnp.float32)

    plan = plan_generator(d_model, vocab)
    w_prep, b_prep = prepare_generator_weights(weight, bias, plan)  # one-time prep

    out = generator_forward(x, w_prep, b_prep, plan)
    out = jax.block_until_ready(out)

    # Reference built with the same bf16-rounded operands and f32 accumulation.
    xb = x.astype(jnp.bfloat16).astype(jnp.float32)
    wb = weight.T.astype(jnp.bfloat16).astype(jnp.float32)
    ref = jax.nn.log_softmax(xb @ wb + bias, axis=-1)

    assert out.shape == (batch, seq, vocab)
    assert bool(jnp.allclose(out, ref, atol=1e-3, rtol=1e-3)), "mismatch vs reference"
    # loose sanity check against the full-f32 reference as well
    ref_f32 = jax.nn.log_softmax(x @ weight.T + bias, axis=-1)
    assert bool(jnp.allclose(out, ref_f32, atol=5e-2, rtol=5e-2))

    print("KERNEL_OK")
</pallas_src>

<mosaic_0001>
module attributes {stable_mosaic.version = 11 : i64} {
  func.func @_fused_logsoftmax_kernel(%arg0: i32, %arg1: i32, %arg2: memref<16x32xbf16, #tpu.memory_space<vmem>>, %arg3: memref<32x128xbf16, #tpu.memory_space<vmem>>, %arg4: memref<1x128xf32, #tpu.memory_space<vmem>>, %arg5: memref<16x128xf32, #tpu.memory_space<vmem>>, %arg6: memref<1x16x128xf32, #tpu.memory_space<vmem>>, %arg7: memref<16x1xf32, #tpu.memory_space<vmem>>, %arg8: memref<16x1xf32, #tpu.memory_space<vmem>>) attributes {dimension_semantics = [#tpu.dimension_semantics<parallel>, #tpu.dimension_semantics<arbitrary>], iteration_bounds = array<i64: 1, 1>, scalar_prefetch = 0 : i64, scratch_operands = 3 : i64, tpu.core_type = #tpu.core_type<tc>, window_params = [{transform_indices = @transform_0, window_bounds = array<i64: 16, 32>}, {transform_indices = @transform_1, window_bounds = array<i64: 32, 128>}, {transform_indices = @transform_2, window_bounds = array<i64: 1, 128>}, {transform_indices = @transform_3, window_bounds = array<i64: 16, 128>}]} {
    %c0_i32 = arith.constant 0 : i32
    %0 = arith.cmpi eq, %arg1, %c0_i32 : i32
    %1 = arith.extui %0 : i1 to i32
    %c0_i32_0 = arith.constant 0 : i32
    %2 = arith.cmpi ne, %1, %c0_i32_0 : i32
    scf.if %2 {
      %cst_22 = arith.constant 0xFF800000 : f32
      %33 = vector.broadcast %cst_22 : f32 to vector<16x1xf32>
      %c0_23 = arith.constant 0 : index
      %c0_24 = arith.constant 0 : index
      %34 = vector.load %arg7[%c0_23, %c0_24] : memref<16x1xf32, #tpu.memory_space<vmem>>, vector<16x1xf32>
      tpu.vector_store %arg7[%c0_23, %c0_24], %33 {strides = array<i32>} : memref<16x1xf32, #tpu.memory_space<vmem>>, vector<16x1xf32>,
      %cst_25 = arith.constant 0.000000e+00 : f32
      %35 = vector.broadcast %cst_25 : f32 to vector<16x1xf32>
      %c0_26 = arith.constant 0 : index
      %c0_27 = arith.constant 0 : index
      %36 = vector.load %arg8[%c0_26, %c0_27] : memref<16x1xf32, #tpu.memory_space<vmem>>, vector<16x1xf32>
      tpu.vector_store %arg8[%c0_26, %c0_27], %35 {strides = array<i32>} : memref<16x1xf32, #tpu.memory_space<vmem>>, vector<16x1xf32>,
    } else {
    }
    %c0 = arith.constant 0 : index
    %c0_1 = arith.constant 0 : index
    %3 = vector.load %arg2[%c0, %c0_1] : memref<16x32xbf16, #tpu.memory_space<vmem>>, vector<16x32xbf16>
    %c0_2 = arith.constant 0 : index
    %c0_3 = arith.constant 0 : index
    %4 = vector.load %arg3[%c0_2, %c0_3] : memref<32x128xbf16, #tpu.memory_space<vmem>>, vector<32x128xbf16>
    %cst = arith.constant dense<0.000000e+00> : vector<16x128xf32>
    %5 = tpu.matmul %3, %4, %cst {dimension_numbers = #tpu.dot_dimension_numbers<[1], [0], [0], [1], [0, 0, 1, 1], [], []>} : vector<16x32xbf16>, vector<32x128xbf16>, vector<16x128xf32> -> vector<16x128xf32>
    %c0_4 = arith.constant 0 : index
    %c0_5 = arith.constant 0 : index
    %6 = vector.load %arg4[%c0_4, %c0_5] : memref<1x128xf32, #tpu.memory_space<vmem>>, vector<1x128xf32>
    %7 = vector.broadcast %6 : vector<1x128xf32> to vector<16x128xf32>
    %8 = arith.addf %5, %7 : vector<16x128xf32>
    %9 = arith.index_cast %arg1 : i32 to index
    %c0_6 = arith.constant 0 : index
    %c0_7 = arith.constant 0 : index
    %10 = vector.load %arg6[%9, %c0_6, %c0_7] : memref<1x16x128xf32, #tpu.memory_space<vmem>>, vector<1x16x128xf32>
    %11 = vector.shape_cast %10 : vector<1x16x128xf32> to vector<16x128xf32>
    %12 = vector.shape_cast %8 : vector<16x128xf32> to vector<1x16x128xf32>
    tpu.vector_store %arg6[%9, %c0_6, %c0_7], %12 {strides = array<i32>} : memref<1x16x128xf32, #tpu.memory_space<vmem>>, vector<1x16x128xf32>,
    %cst_8 = arith.constant dense<0xFF800000> : vector<16xf32>
    %13 = vector.multi_reduction <maximumf>, %8, %cst_8 [1] : vector<16x128xf32> to vector<16xf32>
    %14 = vector.shape_cast %13 : vector<16xf32> to vector<16x1xf32>
    %c0_9 = arith.constant 0 : index
    %c0_10 = arith.constant 0 : index
    %15 = vector.load %arg7[%c0_9, %c0_10] : memref<16x1xf32, #tpu.memory_space<vmem>>, vector<16x1xf32>
    %16 = arith.maximumf %15, %14 : vector<16x1xf32>
    %c0_11 = arith.constant 0 : index
    %c0_12 = arith.constant 0 : index
    %17 = vector.load %arg8[%c0_11, %c0_12] : memref<16x1xf32, #tpu.memory_space<vmem>>, vector<16x1xf32>
    %c0_13 = arith.constant 0 : index
    %c0_14 = arith.constant 0 : index
    %18 = vector.load %arg7[%c0_13, %c0_14] : memref<16x1xf32, #tpu.memory_space<vmem>>, vector<16x1xf32>
    %19 = arith.subf %18, %16 : vector<16x1xf32>
    %20 = math.exp %19 : vector<16x1xf32>
    %21 = arith.mulf %17, %20 : vector<16x1xf32>
    %22 = vector.broadcast %16 : vector<16x1xf32> to vector<16x128xf32>
    %23 = arith.subf %8, %22 : vector<16x128xf32>
    %24 = math.exp %23 : vector<16x128xf32>
    %cst_15 = arith.constant dense<0.000000e+00> : vector<16xf32>
    %25 = vector.multi_reduction <add>, %24, %cst_15 [1] : vector<16x128xf32> to vector<16xf32>
    %26 = vector.shape_cast %25 : vector<16xf32> to vector<16x1xf32>
    %27 = arith.addf %21, %26 : vector<16x1xf32>
    %c0_16 = arith.constant 0 : index
    %c0_17 = arith.constant 0 : index
    %28 = vector.load %arg8[%c0_16, %c0_17] : memref<16x1xf32, #tpu.memory_space<vmem>>, vector<16x1xf32>
    tpu.vector_store %arg8[%c0_16, %c0_17], %27 {strides = array<i32>} : memref<16x1xf32, #tpu.memory_space<vmem>>, vector<16x1xf32>,
    %c0_18 = arith.constant 0 : index
    %c0_19 = arith.constant 0 : index
    %29 = vector.load %arg7[%c0_18, %c0_19] : memref<16x1xf32, #tpu.memory_space<vmem>>, vector<16x1xf32>
    tpu.vector_store %arg7[%c0_18, %c0_19], %16 {strides = array<i32>} : memref<16x1xf32, #tpu.memory_space<vmem>>, vector<16x1xf32>,
    %c0_i32_20 = arith.constant 0 : i32
    %30 = arith.cmpi eq, %arg1, %c0_i32_20 : i32
    %31 = arith.extui %30 : i1 to i32
    %c0_i32_21 = arith.constant 0 : i32
    %32 = arith.cmpi ne, %31, %c0_i32_21 : i32
    scf.if %32 {
      %c0_22 = arith.constant 0 : index
      %c0_23 = arith.constant 0 : index
      %33 = vector.load %arg7[%c0_22, %c0_23] : memref<16x1xf32, #tpu.memory_space<vmem>>, vector<16x1xf32>
      %c0_24 = arith.constant 0 : index
      %c0_25 = arith.constant 0 : index
      %34 = vector.load %arg8[%c0_24, %c0_25] : memref<16x1xf32, #tpu.memory_space<vmem>>, vector<16x1xf32>
      %35 = math.log %34 : vector<16x1xf32>
      %36 = arith.addf %33, %35 : vector<16x1xf32>
      %c0_26 = arith.constant 0 : index
      %c0_27 = arith.constant 0 : index
      %c0_28 = arith.constant 0 : index
      %37 = vector.load %arg6[%c0_26, %c0_27, %c0_28] : memref<1x16x128xf32, #tpu.memory_space<vmem>>, vector<1x16x128xf32>
      %38 = vector.shape_cast %37 : vector<1x16x128xf32> to vector<16x128xf32>
      %39 = vector.broadcast %36 : vector<16x1xf32> to vector<16x128xf32>
      %40 = arith.subf %38, %39 : vector<16x128xf32>
      %c0_29 = arith.constant 0 : index
      %c0_30 = arith.constant 0 : index
      %41 = vector.load %arg5[%c0_29, %c0_30] : memref<16x128xf32, #tpu.memory_space<vmem>>, vector<16x128xf32>
      tpu.vector_store %arg5[%c0_29, %c0_30], %40 {strides = array<i32>} : memref<16x128xf32, #tpu.memory_space<vmem>>, vector<16x128xf32>,
    } else {
    }
    return
  }
  func.func @transform_0(%arg0: i32, %arg1: i32) -> (i32, i32) {
    %c0_i32 = arith.constant 0 : i32
    %c0_i32_0 = arith.constant 0 : i32
    return %arg0, %c0_i32 : i32, i32
  }
  func.func @transform_1(%arg0: i32, %arg1: i32) -> (i32, i32) {
    %c0_i32 = arith.constant 0 : i32
    %c0_i32_0 = arith.constant 0 : i32
    return %c0_i32, %arg1 : i32, i32
  }
  func.func @transform_2(%arg0: i32, %arg1: i32) -> (i32, i32) {
    %c0_i32 = arith.constant 0 : i32
    %c0_i32_0 = arith.constant 0 : i32
    return %c0_i32, %arg1 : i32, i32
  }
  func.func @transform_3(%arg0: i32, %arg1: i32) -> (i32, i32) {
    %c0_i32 = arith.constant 0 : i32
    %c0_i32_0 = arith.constant 0 : i32
    return %arg0, %c0_i32 : i32, i32
  }
}

</mosaic_0001>

<llo_original>
// kernel: tpu_custom_call.1
$region0: #{tpu_custom_call.1}
  #allocation0 [shape = 'u32[]', space=smem, size = 0x4, offset = 0x4, fixed_abs, tag = 'smem constant byte address 0x4 - core index']
  #allocation1 [shape = 'u32[144,128]{1,0:T(1,128)}', space=vmem, size = 0x12000, scoped, tag = 'internal scratch']
  #allocation2 [shape = 'f32[1,16,128]{2,1,0:T(8,128)}', space=vmem, size = 0x2000, scoped, tag = 'scratch operand']
  #allocation3 [shape = 'f32[16,1]{1,0:T(8,128)}', space=vmem, size = 0x2000, scoped, tag = 'scratch operand']
  #allocation4 [shape = 'f32[16,1]{1,0:T(8,128)}', space=vmem, size = 0x2000, scoped, tag = 'scratch operand']
  %s0 = inlined_call_operand.hbm [shape: bf16[16,32], index: 0, kind: input, shape index: {}]
  %s1 = inlined_call_operand.hbm [shape: bf16[32,128], index: 1, kind: input, shape index: {}]
  %s2 = inlined_call_operand.hbm [shape: f32[1,128], index: 2, kind: input, shape index: {}]
  %s3 = inlined_call_operand.hbm [shape: f32[16,128], index: 3, kind: output, shape index: {}]
  %s4 = sld [smem:[#allocation0]]
  $region42: #{tpu_custom_call.1} parent=0
    _
  %s6 = ssub.s32 1, %s4
  %s7 = scalar_select 0, %s6, %s4
  $region1: #{tpu_custom_call.1} parent=0
    #allocation5 [shape = 'u8[4096]{0}', space=vmem, size = 0x1000, scoped, tag = 'input window, operand 0, single buffered']
    #allocation6 [shape = 's32[1]{0}', space=sflag, size = 0x4, scoped, tag = 'scoped memory for tpu_custom_call.1']
    #allocation7 [shape = 's32[1]{0}', space=sflag, size = 0x4, scoped, tag = 'scoped memory for tpu_custom_call.1']
    #allocation8 [shape = 'u8[8192]{0}', space=vmem, size = 0x2000, scoped, tag = 'input window, operand 1, single buffered']
    #allocation9 [shape = 's32[1]{0}', space=sflag, size = 0x4, scoped, tag = 'scoped memory for tpu_custom_call.1']
    #allocation10 [shape = 'u8[512]{0}', space=vmem, size = 0x400, scoped, tag = 'input window, operand 2, single buffered']
    #allocation11 [shape = 'u8[8192]{0}', space=vmem, size = 0x2000, scoped, tag = 'output window, operand 0, single buffered']
    %8 = vsyncpa [#allocation6], 0
    %9 = vsyncpa [#allocation9], 0
    %10 = vsyncpa [#allocation7], 0
    // Predicated region
    $region2: #{tpu_custom_call.1} parent=1 // pred_check
      _
    $region3: #{tpu_custom_call.1} parent=1 // pred_check_branch
      %12 = sbr.rel (0) target = $region5
    $region4: #{tpu_custom_call.1} parent=1 // pred_region
      %s14 = ssub.s32 128, 128
      %15 = vsyncadd [#allocation6], %s14
      %s16 = sshll.u32 [#allocation5], 4
      %s17 = int_to_ptr.vmem [resolvable:$true] %s16
      %22 = dma.hbm_to_vmem [thread:$0]  %s0, 128, %s17, [#allocation6], 64, 64, 4
    $region5: #{tpu_custom_call.1} parent=1 // pred_fallthru
      _
    // Predicated region
    $region6: #{tpu_custom_call.1} parent=1 // pred_check
      _
    $region7: #{tpu_custom_call.1} parent=1 // pred_check_branch
      %24 = sbr.rel (0) target = $region9
    $region8: #{tpu_custom_call.1} parent=1 // pred_region
      %s26 = ssub.s32 256, 256
      %27 = vsyncadd [#allocation9], %s26
      %s28 = sshll.u32 [#allocation8], 4
      %s29 = int_to_ptr.vmem [resolvable:$true] %s28
      %34 = dma.hbm_to_vmem [thread:$0]  %s1, 256, %s29, [#allocation9], 64, 64, 4
    $region9: #{tpu_custom_call.1} parent=1 // pred_fallthru
      _
    // Predicated region
    $region10: #{tpu_custom_call.1} parent=1 // pred_check
      _
    $region11: #{tpu_custom_call.1} parent=1 // pred_check_branch
      %36 = sbr.rel (0) target = $region13
    $region12: #{tpu_custom_call.1} parent=1 // pred_region
      %s38 = ssub.s32 16, 16
      %39 = vsyncadd [#allocation9], %s38
      %s41 = sshll.u32 [#allocation10], 4
      %s42 = int_to_ptr.vmem [resolvable:$true] %s41
      %44 = dma.hbm_to_vmem [thread:$0]  %s2, 16, %s42, [#allocation9]
    $region13: #{tpu_custom_call.1} parent=1 // pred_fallthru
      _
    // Predicated region
    $region14: #{tpu_custom_call.1} parent=1 // pred_check
      _
    $region15: #{tpu_custom_call.1} parent=1 // pred_check_branch
      %46 = sbr.rel (0) target = $region17
    $region16: #{tpu_custom_call.1} parent=1 // pred_region
      %47 = dma.done [#allocation6], 128
    $region17: #{tpu_custom_call.1} parent=1 // pred_fallthru
      _
    // Predicated region
    $region18: #{tpu_custom_call.1} parent=1 // pred_check
      _
    $region19: #{tpu_custom_call.1} parent=1 // pred_check_branch
      %49 = sbr.rel (0) target = $region21
    $region20: #{tpu_custom_call.1} parent=1 // pred_region
      %50 = dma.done [#allocation9], 256
    $region21: #{tpu_custom_call.1} parent=1 // pred_fallthru
      _
    // Predicated region
    $region22: #{tpu_custom_call.1} parent=1 // pred_check
      _
    $region23: #{tpu_custom_call.1} parent=1 // pred_check_branch
      %52 = sbr.rel (0) target = $region25
    $region24: #{tpu_custom_call.1} parent=1 // pred_region
      %53 = dma.done [#allocation9], 16
    $region25: #{tpu_custom_call.1} parent=1 // pred_fallthru
      _
    %p55 = scmp.eq.s32.totalorder 0, 0
    // Predicated region
    $region26: #{tpu_custom_call.1} parent=1 // pred_check
      %p56 = pneg %p55
    $region27: #{tpu_custom_call.1} parent=1 // pred_check_branch
      %58 = sbr.rel (%p56) target = $region29
    $region28: #{tpu_custom_call.1} parent=1 // pred_region
      %vm59 = vcmask 7168
      %60 = vst.msk [vmem:[#allocation3] sm:$0xff] %vm59, -inf
      %61 = vst.msk [vmem:[#allocation3 + $0x8] sm:$0xff] %vm59, -inf
      %62 = vst.msk [vmem:[#allocation4] sm:$0xff] %vm59, 0.0
      %63 = vst.msk [vmem:[#allocation4 + $0x8] sm:$0xff] %vm59, 0.0
    $region29: #{tpu_custom_call.1} parent=1 // pred_fallthru
      _
    %v64 = vld [vmem:[#allocation5] sm:$0xf]
    %v65 = vld [vmem:[#allocation5 + $0x4] sm:$0xf]
    %v66 = vld [vmem:[#allocation8] sm:$0xf]
    %v67 = vld [vmem:[#allocation8 + $0x4] sm:$0xf]
    %v68 = vld [vmem:[#allocation8 + $0x8] sm:$0xf]
    %v69 = vld [vmem:[#allocation8 + $0xc] sm:$0xf]
    %v70 = vld [vmem:[#allocation10] sm:$0x1]
    %v72 = vlaneseq
    %v73 = vshrl.u32 %v72, 7
    %v74 = vsub.s32 0, %v73
    %v75 = vrot.slane %v70, %v74
    %v79 = vunpack.c.l.b16 %v64
    %v80 = vunpack.c.l.b16 %v65
    %v81 = vpack.c.b16 %v80, %v79
    %v86 = vunpack.c.l.b16 %v66
    %v87 = vunpack.c.l.b16 %v67
    %v88 = vunpack.c.l.b16 %v68
    %v89 = vunpack.c.l.b16 %v69
    %v90 = vpack.c.b16 %v87, %v86
    %v91 = vpack.c.b16 %v89, %v88
    %vm94 = vcmask 261120
    %v96 = vsel %vm94, %v81, 0
    %98 = vmatprep.subr.bf16.mxu0 0
    %99 = vmatpush1.bf16.msra.mxu0 %v90
    %100 = vmatprep.subr.bf16.mxu0 0
    %101 = vmatpush1.bf16.msra.mxu0 %v91
    %102 = vmatprep.subr.bf16.mxu0 0
    %103 = vmatpush1.bf16.msra.mxu0 0
    %104 = vmatprep.subr.bf16.mxu0 0
    %105 = vmatpush1.bf16.msra.mxu0 0
    %106 = vmatprep.subr.bf16.mxu0 0
    %107 = vmatpush1.bf16.msra.mxu0 0
    %108 = vmatprep.subr.bf16.mxu0 0
    %109 = vmatpush1.bf16.msra.mxu0 0
    %110 = vmatprep.subr.bf16.mxu0 0
    %111 = vmatpush1.bf16.msra.mxu0 0
    %112 = vmatprep.subr.bf16.mxu0 0
    %113 = vmatpush1.bf16.msra.mxu0 0
    %114 = vmatprep.subr.bf16.mxu0 0
    %115 = vmatpush1.bf16.msra.mxu0 0
    %116 = vmatprep.subr.bf16.mxu0 0
    %117 = vmatpush1.bf16.msra.mxu0 0
    %118 = vmatprep.subr.bf16.mxu0 0
    %119 = vmatpush1.bf16.msra.mxu0 0
    %120 = vmatprep.subr.bf16.mxu0 0
    %121 = vmatpush1.bf16.msra.mxu0 0
    %122 = vmatprep.subr.bf16.mxu0 0
    %123 = vmatpush1.bf16.msra.mxu0 0
    %124 = vmatprep.subr.bf16.mxu0 0
    %125 = vmatpush1.bf16.msra.mxu0 0
    %126 = vmatprep.subr.bf16.mxu0 0
    %127 = vmatpush1.bf16.msra.mxu0 0
    %128 = vmatprep.subr.bf16.mxu0 0
    %129 = vmatpush1.bf16.msra.mxu0 0
    %130 = vmatprep.mubr.bf16.mxu0 0
    %131 = vmatmul.mubr.bf16.gmra.mrb[0].mxu0 %v96
    %v132 = vpop.f32.mrb[0].mxu0
    %v133 = vadd.f32 %v75, %v132
    %v134 = vpop.f32.mrb[0].mxu0
    %v135 = vpop.f32.mrb[0].mxu0
    %v136 = vadd.f32 %v75, %v135
    %v137 = vpop.f32.mrb[0].mxu0
    %138 = vdwg.mxu0
    %s139 = smul.u32 0, 16
    %s140 = scalar_lea.vmem [#allocation2], %s139
    %141 = vst [vmem:[%s140] sm:$0xff] %v133
    %142 = vst [vmem:[%s140 + $0x8] sm:$0xff] %v136
    %143 = vmax.xlane.f32.xlu0 %v133
    %v144 = vpop.xlane.xlu0 %143
    %145 = vmax.xlane.f32.xlu0 %v136
    %v146 = vpop.xlane.xlu0 %145
    %v147 = vld [vmem:[#allocation3] sm:$0xff]
    %v148 = vld [vmem:[#allocation3 + $0x8] sm:$0xff]
    %v149 = vmax.f32 %v147, %v144
    %v150 = vmax.f32 %v148, %v146
    %v151 = vld [vmem:[#allocation4] sm:$0xff]
    %v152 = vld [vmem:[#allocation4 + $0x8] sm:$0xff]
    %v153 = vsub.f32 %v147, %v149
    %v154 = vsub.f32 %v148, %v150
    %v155 = vmul.f32 %v153, 1.442695
    %v156 = vpow.pop %v155
    %v157 = vmul.f32 %v154, 1.442695
    %v158 = vpow.pop %v157
    %v159 = vmul.f32 %v151, %v156
    %v160 = vmul.f32 %v152, %v158
    %162 = vset.pattern.permute.xlu0 0
    %163 = vperm.xlu0 %162, %v149
    %v164 = vpop.permute.xlu0 %163
    %167 = vset.pattern.permute.xlu0 0
    %168 = vperm.xlu0 %167, %v150
    %v169 = vpop.permute.xlu0 %168
    %v171 = vsub.f32 %v133, %v164
    %v172 = vsub.f32 %v136, %v169
    %v173 = vmul.f32 %v171, 1.442695
    %v174 = vpow.pop %v173
    %v175 = vmul.f32 %v172, 1.442695
    %v176 = vpow.pop %v175
    %177 = vadd.xlane.f32.xlu0 %v174
    %v178 = vpop.xlane.xlu0 %177
    %179 = vadd.xlane.f32.xlu0 %v176
    %v180 = vpop.xlane.xlu0 %179
    %v181 = vadd.f32 %v159, %v178
    %v182 = vadd.f32 %v160, %v180
    %vm183 = vcmask 7168
    %184 = vst.msk [vmem:[#allocation4] sm:$0xff] %vm183, %v181
    %185 = vst.msk [vmem:[#allocation4 + $0x8] sm:$0xff] %vm183, %v182
    %186 = vst.msk [vmem:[#allocation3] sm:$0xff] %vm183, %v149
    %187 = vst.msk [vmem:[#allocation3 + $0x8] sm:$0xff] %vm183, %v150
    // Predicated region
    $region30: #{tpu_custom_call.1} parent=1 // pred_check
      %p188 = pneg %p55
    $region31: #{tpu_custom_call.1} parent=1 // pred_check_branch
      %190 = sbr.rel (%p188) target = $region33
    $region32: #{tpu_custom_call.1} parent=1 // pred_region
      %v191 = vld [vmem:[#allocation3] sm:$0xff]
      %v192 = vld [vmem:[#allocation3 + $0x8] sm:$0xff]
      %v193 = vld [vmem:[#allocation4] sm:$0xff]
      %v194 = vld [vmem:[#allocation4 + $0x8] sm:$0xff]
      %v195 = vlog2.pop %v193
      %v196 = vmul.f32 %v195, 0.6931472
      %v197 = vlog2.pop %v194
      %v198 = vmul.f32 %v197, 0.6931472
      %v199 = vadd.f32 %v191, %v196
      %v200 = vadd.f32 %v192, %v198
      %v201 = vld [vmem:[#allocation2] sm:$0xff]
      %v202 = vld [vmem:[#allocation2 + $0x8] sm:$0xff]
      %204 = vset.pattern.permute.xlu0 0
      %205 = vperm.xlu0 %204, %v199
      %v206 = vpop.permute.xlu0 %205
      %209 = vset.pattern.permute.xlu0 0
      %210 = vperm.xlu0 %209, %v200
      %v211 = vpop.permute.xlu0 %210
      %v213 = vsub.f32 %v201, %v206
      %v214 = vsub.f32 %v202, %v211
      %215 = vst [vmem:[#allocation11] sm:$0xff] %v213
      %216 = vst [vmem:[#allocation11 + $0x8] sm:$0xff] %v214
    $region33: #{tpu_custom_call.1} parent=1 // pred_fallthru
      _
    // Predicated region
    $region34: #{tpu_custom_call.1} parent=1 // pred_check
      _
    $region35: #{tpu_custom_call.1} parent=1 // pred_check_branch
      %218 = sbr.rel (0) target = $region37
    $region36: #{tpu_custom_call.1} parent=1 // pred_region
      %s220 = ssub.s32 256, 256
      %221 = vsyncadd [#allocation7], %s220
      %s222 = sshll.u32 [#allocation11], 4
      %s223 = int_to_ptr.vmem [resolvable:$true] %s222
      %228 = dma.vmem_to_hbm [thread:$0]  %s223, 256, %s3, [#allocation7], 128, 128, 8
    $region37: #{tpu_custom_call.1} parent=1 // pred_fallthru
      _
    // Predicated region
    $region38: #{tpu_custom_call.1} parent=1 // pred_check
      _
    $region39: #{tpu_custom_call.1} parent=1 // pred_check_branch
      %230 = sbr.rel (0) target = $region41
    $region40: #{tpu_custom_call.1} parent=1 // pred_region
      %231 = dma.done [#allocation7], 256
    $region41: #{tpu_custom_call.1} parent=1 // pred_fallthru
      _
    %232 = vsyncpa [#allocation6], 1
    %233 = vsyncpa [#allocation9], 1
    %234 = vsyncpa [#allocation7], 1

</llo_original>
